<compile_context>
chip_gen: v7x
topology: tpu7x:2x2x1
jax: 0.10.0
libtpu: 0.0.40
codegen_flags: <defaults>
</compile_context>

<pallas_src>
import jax
import jax.numpy as jnp
from jax.experimental import pallas as pl
from jax.experimental.pallas import tpu as pltpu

_BN_EPS = 1e-5
_LANE = 128
_SUBLANE = 8


def _round_up(x, m):
    return (x + m - 1) // m * m


# ---------------------------------------------------------------------------
# Parameter init (PyTorch-equivalent shapes / conventions).
# Linear weights stored transposed as [in_dim, out_dim]; input-row ordering
# matches the PyTorch concat order [h_{i-1}, ..., h_0, x].
# ---------------------------------------------------------------------------
def init_generator_params(key, embedding_dim, generator_dim, data_dim):
    params = {"residuals": []}
    dim = embedding_dim
    for out_dim in generator_dim:
        key, kw, kb = jax.random.split(key, 3)
        bound = 1.0 / float(dim) ** 0.5
        w = jax.random.uniform(kw, (dim, out_dim), jnp.float32, -bound, bound)
        b = jax.random.uniform(kb, (out_dim,), jnp.float32, -bound, bound)
        gamma = jnp.ones((out_dim,), jnp.float32)
        beta = jnp.zeros((out_dim,), jnp.float32)
        params["residuals"].append({"w": w, "b": b, "gamma": gamma, "beta": beta})
        dim += out_dim
    key, kw, kb = jax.random.split(key, 3)
    bound = 1.0 / float(dim) ** 0.5
    params["final_w"] = jax.random.uniform(kw, (dim, data_dim), jnp.float32, -bound, bound)
    params["final_b"] = jax.random.uniform(kb, (data_dim,), jnp.float32, -bound, bound)
    return params


# ---------------------------------------------------------------------------
# One-time parameter re-layout for the fused kernel (outside the jit hot path).
# ---------------------------------------------------------------------------
def _rows_to_slab_order(w_t, embedding_dim, generator_dim, n_prev):
    """Permute weight input rows from concat order [h_{n-1},...,h_0,x]
    to slab order [x, h_0, ..., h_{n-1}]."""
    gd = list(generator_dim[:n_prev])
    in_dim = w_t.shape[0]
    segs = [w_t[in_dim - embedding_dim:]]          # x rows
    for j in range(n_prev):                        # h_j rows in slab order
        off = int(sum(gd[j + 1:]))
        segs.append(w_t[off: off + gd[j]])
    return jnp.concatenate(segs, axis=0) if len(segs) > 1 else segs[0]


def pack_generator_params(params, embedding_dim, generator_dim, data_dim):
    generator_dim = tuple(int(d) for d in generator_dim)
    slab_w = _round_up(embedding_dim + sum(generator_dim), _LANE)
    out_w = _round_up(data_dim, _LANE)

    blocks = []
    for i, p in enumerate(params["residuals"]):
        w_slab = _rows_to_slab_order(p["w"], embedding_dim, generator_dim, i)
        w_pad = jnp.zeros((slab_w, w_slab.shape[1]), jnp.float32)
        w_pad = w_pad.at[: w_slab.shape[0], :].set(w_slab)
        # NOTE: residual Linear bias intentionally dropped -- it is cancelled
        # exactly by the training-mode BatchNorm mean subtraction.
        blocks += [
            w_pad,
            p["gamma"].reshape(1, -1).astype(jnp.float32),
            p["beta"].reshape(1, -1).astype(jnp.float32),
        ]

    wf_slab = _rows_to_slab_order(
        params["final_w"], embedding_dim, generator_dim, len(generator_dim))
    wf_pad = jnp.zeros((slab_w, out_w), jnp.float32)
    wf_pad = wf_pad.at[: wf_slab.shape[0], :data_dim].set(wf_slab)
    bf_pad = jnp.zeros((1, out_w), jnp.float32)
    bf_pad = bf_pad.at[0, :data_dim].set(params["final_b"].astype(jnp.float32))

    return {"blocks": tuple(blocks), "final_w": wf_pad, "final_b": bf_pad}


# ---------------------------------------------------------------------------
# Fused forward.
# ---------------------------------------------------------------------------
def make_generator_forward(embedding_dim, generator_dim, data_dim):
    generator_dim = tuple(int(d) for d in generator_dim)
    n_blocks = len(generator_dim)
    slab_w = _round_up(embedding_dim + sum(generator_dim), _LANE)
    out_w = _round_up(data_dim, _LANE)

    def _make_kernel(batch, b_pad):
        inv_b = 1.0 / float(batch)

        def kernel(*refs):
            x_ref = refs[0]
            blk = refs[1:1 + 3 * n_blocks]
            wf_ref = refs[1 + 3 * n_blocks]
            bf_ref = refs[2 + 3 * n_blocks]
            out_ref = refs[3 + 3 * n_blocks]
            slab_ref = refs[4 + 3 * n_blocks]

            # Seed the activation slab; feature columns past embedding_dim and
            # padded batch rows are zero.
            slab_ref[...] = x_ref[...]

            # Row mask over the true batch (padded rows excluded from BN stats).
            mask = (jax.lax.broadcasted_iota(jnp.int32, (b_pad, 1), 0)
                    < batch).astype(jnp.float32)

            col = embedding_dim
            for i, out_dim in enumerate(generator_dim):
                w = blk[3 * i][...]          # [slab_w, out_dim] (zero-padded rows)
                gamma = blk[3 * i + 1][...]  # [1, out_dim]
                beta = blk[3 * i + 2][...]   # [1, out_dim]

                # Slab columns >= current input width are zero, so the
                # full-slab-width matmul is exact.
                h = jnp.dot(slab_ref[...], w, preferred_element_type=jnp.float32)

                # BatchNorm1d (training mode): batch mean, biased variance.
                hm = h * mask
                mean = jnp.sum(hm, axis=0, keepdims=True) * inv_b
                cen = (h - mean) * mask
                var = jnp.sum(cen * cen, axis=0, keepdims=True) * inv_b
                hn = (h - mean) * jax.lax.rsqrt(var + _BN_EPS) * gamma + beta

                # Residual concat == write into this block's slab slice.
                slab_ref[:, col:col + out_dim] = jnp.maximum(hn, 0.0)
                col += out_dim

            # Final Linear, lane-dense (out_w is a multiple of 128) output store.
            out_ref[...] = (
                jnp.dot(slab_ref[...], wf_ref[...],
                        preferred_element_type=jnp.float32)
                + bf_ref[...]
            )

        return kernel

    @jax.jit
    def forward(packed, x):
        batch = x.shape[0]
        b_pad = _round_up(max(batch, _SUBLANE), _SUBLANE)
        x_pad = jnp.zeros((b_pad, slab_w), jnp.float32)
        x_pad = x_pad.at[:batch, :embedding_dim].set(x.astype(jnp.float32))

        vmem = pl.BlockSpec(memory_space=pltpu.MemorySpace.VMEM)
        n_in = 1 + 3 * n_blocks + 2
        out = pl.pallas_call(
            _make_kernel(batch, b_pad),
            out_shape=jax.ShapeDtypeStruct((b_pad, out_w), jnp.float32),
            in_specs=[vmem] * n_in,
            out_specs=vmem,
            scratch_shapes=[pltpu.VMEM((b_pad, slab_w), jnp.float32)],
        )(x_pad, *packed["blocks"], packed["final_w"], packed["final_b"])
        return out[:batch, :data_dim]

    return forward


# ---------------------------------------------------------------------------
# Plain-JAX reference (mirrors the PyTorch module exactly, incl. the residual
# Linear bias, which the fused kernel drops because BN cancels it).
# ---------------------------------------------------------------------------
def reference_forward(params, x):
    out = x
    for p in params["residuals"]:
        h = out @ p["w"] + p["b"]
        mean = jnp.mean(h, axis=0, keepdims=True)
        var = jnp.mean((h - mean) ** 2, axis=0, keepdims=True)
        hn = (h - mean) * jax.lax.rsqrt(var + _BN_EPS) * p["gamma"] + p["beta"]
        out = jnp.concatenate([jnp.maximum(hn, 0.0), out], axis=1)
    return out @ params["final_w"] + params["final_b"]


if __name__ == "__main__":
    embedding_dim = 32
    generator_dim = (32, 32)
    data_dim = 16
    batch = 8

    key = jax.random.PRNGKey(0)
    key, kx, kp = jax.random.split(key, 3)
    x = jax.random.normal(kx, (batch, embedding_dim), jnp.float32)
    params = init_generator_params(kp, embedding_dim, generator_dim, data_dim)

    packed = pack_generator_params(params, embedding_dim, generator_dim, data_dim)
    forward = make_generator_forward(embedding_dim, generator_dim, data_dim)

    out = forward(packed, x)
    jax.block_until_ready(out)

    ref = reference_forward(params, x)
    assert out.shape == (batch, data_dim), out.shape
    assert bool(jnp.all(jnp.isfinite(out)))
    assert bool(jnp.allclose(out, ref, rtol=1e-3, atol=1e-3)), float(
        jnp.max(jnp.abs(out - ref)))
    print("KERNEL_OK")
</pallas_src>

<mosaic_0001>
module attributes {stable_mosaic.version = 11 : i64} {
  func.func @kernel(%arg0: memref<8x128xf32, #tpu.memory_space<vmem>>, %arg1: memref<128x32xf32, #tpu.memory_space<vmem>>, %arg2: memref<1x32xf32, #tpu.memory_space<vmem>>, %arg3: memref<1x32xf32, #tpu.memory_space<vmem>>, %arg4: memref<128x32xf32, #tpu.memory_space<vmem>>, %arg5: memref<1x32xf32, #tpu.memory_space<vmem>>, %arg6: memref<1x32xf32, #tpu.memory_space<vmem>>, %arg7: memref<128x128xf32, #tpu.memory_space<vmem>>, %arg8: memref<1x128xf32, #tpu.memory_space<vmem>>, %arg9: memref<8x128xf32, #tpu.memory_space<vmem>>, %arg10: memref<8x128xf32, #tpu.memory_space<vmem>>) attributes {dimension_semantics = [], scalar_prefetch = 0 : i64, scratch_operands = 1 : i64, tpu.core_type = #tpu.core_type<tc>} {
    %c0 = arith.constant 0 : index
    %c0_0 = arith.constant 0 : index
    %0 = vector.load %arg0[%c0, %c0_0] : memref<8x128xf32, #tpu.memory_space<vmem>>, vector<8x128xf32>
    %c0_1 = arith.constant 0 : index
    %c0_2 = arith.constant 0 : index
    %1 = vector.load %arg10[%c0_1, %c0_2] : memref<8x128xf32, #tpu.memory_space<vmem>>, vector<8x128xf32>
    tpu.vector_store %arg10[%c0_1, %c0_2], %0 {strides = array<i32>} : memref<8x128xf32, #tpu.memory_space<vmem>>, vector<8x128xf32>,
    %2 = tpu.iota {dimensions = array<i32: 0>} : vector<8x1xi32>
    %c8_i32 = arith.constant 8 : i32
    %3 = vector.broadcast %c8_i32 : i32 to vector<8x1xi32>
    %4 = arith.cmpi slt, %2, %3 : vector<8x1xi32>
    %5 = arith.extui %4 : vector<8x1xi1> to vector<8x1xi32>
    %6 = arith.sitofp %5 : vector<8x1xi32> to vector<8x1xf32>
    %c0_3 = arith.constant 0 : index
    %c0_4 = arith.constant 0 : index
    %7 = vector.load %arg1[%c0_3, %c0_4] : memref<128x32xf32, #tpu.memory_space<vmem>>, vector<128x32xf32>
    %c0_5 = arith.constant 0 : index
    %c0_6 = arith.constant 0 : index
    %8 = vector.load %arg2[%c0_5, %c0_6] : memref<1x32xf32, #tpu.memory_space<vmem>>, vector<1x32xf32>
    %c0_7 = arith.constant 0 : index
    %c0_8 = arith.constant 0 : index
    %9 = vector.load %arg3[%c0_7, %c0_8] : memref<1x32xf32, #tpu.memory_space<vmem>>, vector<1x32xf32>
    %c0_9 = arith.constant 0 : index
    %c0_10 = arith.constant 0 : index
    %10 = vector.load %arg10[%c0_9, %c0_10] : memref<8x128xf32, #tpu.memory_space<vmem>>, vector<8x128xf32>
    %cst = arith.constant dense<0.000000e+00> : vector<8x32xf32>
    %11 = tpu.matmul %10, %7, %cst {dimension_numbers = #tpu.dot_dimension_numbers<[1], [0], [0], [1], [0, 0, 1, 1], [], []>} : vector<8x128xf32>, vector<128x32xf32>, vector<8x32xf32> -> vector<8x32xf32>
    %12 = vector.broadcast %6 : vector<8x1xf32> to vector<8x32xf32>
    %13 = arith.mulf %11, %12 : vector<8x32xf32>
    %cst_11 = arith.constant dense<0.000000e+00> : vector<32xf32>
    %14 = vector.multi_reduction <add>, %13, %cst_11 [0] : vector<8x32xf32> to vector<32xf32>
    %15 = vector.shape_cast %14 : vector<32xf32> to vector<1x32xf32>
    %cst_12 = arith.constant 1.250000e-01 : f32
    %16 = vector.broadcast %cst_12 : f32 to vector<1x32xf32>
    %17 = arith.mulf %15, %16 : vector<1x32xf32>
    %18 = vector.broadcast %17 : vector<1x32xf32> to vector<8x32xf32>
    %19 = arith.subf %11, %18 : vector<8x32xf32>
    %20 = vector.broadcast %6 : vector<8x1xf32> to vector<8x32xf32>
    %21 = arith.mulf %19, %20 : vector<8x32xf32>
    %22 = arith.mulf %21, %21 : vector<8x32xf32>
    %cst_13 = arith.constant dense<0.000000e+00> : vector<32xf32>
    %23 = vector.multi_reduction <add>, %22, %cst_13 [0] : vector<8x32xf32> to vector<32xf32>
    %24 = vector.shape_cast %23 : vector<32xf32> to vector<1x32xf32>
    %cst_14 = arith.constant 1.250000e-01 : f32
    %25 = vector.broadcast %cst_14 : f32 to vector<1x32xf32>
    %26 = arith.mulf %24, %25 : vector<1x32xf32>
    %27 = vector.broadcast %17 : vector<1x32xf32> to vector<8x32xf32>
    %28 = arith.subf %11, %27 : vector<8x32xf32>
    %cst_15 = arith.constant 9.99999974E-6 : f32
    %29 = vector.broadcast %cst_15 : f32 to vector<1x32xf32>
    %30 = arith.addf %26, %29 : vector<1x32xf32>
    %31 = math.rsqrt %30 : vector<1x32xf32>
    %32 = vector.broadcast %31 : vector<1x32xf32> to vector<8x32xf32>
    %33 = arith.mulf %28, %32 : vector<8x32xf32>
    %34 = vector.broadcast %8 : vector<1x32xf32> to vector<8x32xf32>
    %35 = arith.mulf %33, %34 : vector<8x32xf32>
    %36 = vector.broadcast %9 : vector<1x32xf32> to vector<8x32xf32>
    %37 = arith.addf %35, %36 : vector<8x32xf32>
    %cst_16 = arith.constant 0.000000e+00 : f32
    %38 = vector.broadcast %cst_16 : f32 to vector<8x32xf32>
    %39 = arith.maximumf %37, %38 : vector<8x32xf32>
    %c0_17 = arith.constant 0 : index
    %c32 = arith.constant 32 : index
    %40 = vector.load %arg10[%c0_17, %c32] : memref<8x128xf32, #tpu.memory_space<vmem>>, vector<8x32xf32>
    tpu.vector_store %arg10[%c0_17, %c32], %39 {strides = array<i32>} : memref<8x128xf32, #tpu.memory_space<vmem>>, vector<8x32xf32>,
    %c0_18 = arith.constant 0 : index
    %c0_19 = arith.constant 0 : index
    %41 = vector.load %arg4[%c0_18, %c0_19] : memref<128x32xf32, #tpu.memory_space<vmem>>, vector<128x32xf32>
    %c0_20 = arith.constant 0 : index
    %c0_21 = arith.constant 0 : index
    %42 = vector.load %arg5[%c0_20, %c0_21] : memref<1x32xf32, #tpu.memory_space<vmem>>, vector<1x32xf32>
    %c0_22 = arith.constant 0 : index
    %c0_23 = arith.constant 0 : index
    %43 = vector.load %arg6[%c0_22, %c0_23] : memref<1x32xf32, #tpu.memory_space<vmem>>, vector<1x32xf32>
    %c0_24 = arith.constant 0 : index
    %c0_25 = arith.constant 0 : index
    %44 = vector.load %arg10[%c0_24, %c0_25] : memref<8x128xf32, #tpu.memory_space<vmem>>, vector<8x128xf32>
    %cst_26 = arith.constant dense<0.000000e+00> : vector<8x32xf32>
    %45 = tpu.matmul %44, %41, %cst_26 {dimension_numbers = #tpu.dot_dimension_numbers<[1], [0], [0], [1], [0, 0, 1, 1], [], []>} : vector<8x128xf32>, vector<128x32xf32>, vector<8x32xf32> -> vector<8x32xf32>
    %46 = vector.broadcast %6 : vector<8x1xf32> to vector<8x32xf32>
    %47 = arith.mulf %45, %46 : vector<8x32xf32>
    %cst_27 = arith.constant dense<0.000000e+00> : vector<32xf32>
    %48 = vector.multi_reduction <add>, %47, %cst_27 [0] : vector<8x32xf32> to vector<32xf32>
    %49 = vector.shape_cast %48 : vector<32xf32> to vector<1x32xf32>
    %cst_28 = arith.constant 1.250000e-01 : f32
    %50 = vector.broadcast %cst_28 : f32 to vector<1x32xf32>
    %51 = arith.mulf %49, %50 : vector<1x32xf32>
    %52 = vector.broadcast %51 : vector<1x32xf32> to vector<8x32xf32>
    %53 = arith.subf %45, %52 : vector<8x32xf32>
    %54 = vector.broadcast %6 : vector<8x1xf32> to vector<8x32xf32>
    %55 = arith.mulf %53, %54 : vector<8x32xf32>
    %56 = arith.mulf %55, %55 : vector<8x32xf32>
    %cst_29 = arith.constant dense<0.000000e+00> : vector<32xf32>
    %57 = vector.multi_reduction <add>, %56, %cst_29 [0] : vector<8x32xf32> to vector<32xf32>
    %58 = vector.shape_cast %57 : vector<32xf32> to vector<1x32xf32>
    %cst_30 = arith.constant 1.250000e-01 : f32
    %59 = vector.broadcast %cst_30 : f32 to vector<1x32xf32>
    %60 = arith.mulf %58, %59 : vector<1x32xf32>
    %61 = vector.broadcast %51 : vector<1x32xf32> to vector<8x32xf32>
    %62 = arith.subf %45, %61 : vector<8x32xf32>
    %cst_31 = arith.constant 9.99999974E-6 : f32
    %63 = vector.broadcast %cst_31 : f32 to vector<1x32xf32>
    %64 = arith.addf %60, %63 : vector<1x32xf32>
    %65 = math.rsqrt %64 : vector<1x32xf32>
    %66 = vector.broadcast %65 : vector<1x32xf32> to vector<8x32xf32>
    %67 = arith.mulf %62, %66 : vector<8x32xf32>
    %68 = vector.broadcast %42 : vector<1x32xf32> to vector<8x32xf32>
    %69 = arith.mulf %67, %68 : vector<8x32xf32>
    %70 = vector.broadcast %43 : vector<1x32xf32> to vector<8x32xf32>
    %71 = arith.addf %69, %70 : vector<8x32xf32>
    %cst_32 = arith.constant 0.000000e+00 : f32
    %72 = vector.broadcast %cst_32 : f32 to vector<8x32xf32>
    %73 = arith.maximumf %71, %72 : vector<8x32xf32>
    %c0_33 = arith.constant 0 : index
    %c64 = arith.constant 64 : index
    %74 = vector.load %arg10[%c0_33, %c64] : memref<8x128xf32, #tpu.memory_space<vmem>>, vector<8x32xf32>
    tpu.vector_store %arg10[%c0_33, %c64], %73 {strides = array<i32>} : memref<8x128xf32, #tpu.memory_space<vmem>>, vector<8x32xf32>,
    %c0_34 = arith.constant 0 : index
    %c0_35 = arith.constant 0 : index
    %75 = vector.load %arg10[%c0_34, %c0_35] : memref<8x128xf32, #tpu.memory_space<vmem>>, vector<8x128xf32>
    %c0_36 = arith.constant 0 : index
    %c0_37 = arith.constant 0 : index
    %76 = vector.load %arg7[%c0_36, %c0_37] : memref<128x128xf32, #tpu.memory_space<vmem>>, vector<128x128xf32>
    %cst_38 = arith.constant dense<0.000000e+00> : vector<8x128xf32>
    %77 = tpu.matmul %75, %76, %cst_38 {dimension_numbers = #tpu.dot_dimension_numbers<[1], [0], [0], [1], [0, 0, 1, 1], [], []>} : vector<8x128xf32>, vector<128x128xf32>, vector<8x128xf32> -> vector<8x128xf32>
    %c0_39 = arith.constant 0 : index
    %c0_40 = arith.constant 0 : index
    %78 = vector.load %arg8[%c0_39, %c0_40] : memref<1x128xf32, #tpu.memory_space<vmem>>, vector<1x128xf32>
    %79 = vector.broadcast %78 : vector<1x128xf32> to vector<8x128xf32>
    %80 = arith.addf %77, %79 : vector<8x128xf32>
    %c0_41 = arith.constant 0 : index
    %c0_42 = arith.constant 0 : index
    %81 = vector.load %arg9[%c0_41, %c0_42] : memref<8x128xf32, #tpu.memory_space<vmem>>, vector<8x128xf32>
    tpu.vector_store %arg9[%c0_41, %c0_42], %80 {strides = array<i32>} : memref<8x128xf32, #tpu.memory_space<vmem>>, vector<8x128xf32>,
    return
  }
}

</mosaic_0001>

<llo_original>
// kernel: forward.1
$region0: #{forward.1}
  #allocation0 [shape = 'u32[]', space=smem, size = 0x4, offset = 0x4, fixed_abs, tag = 'smem constant byte address 0x4 - core index']
  #allocation1 [shape = 'u32[144,128]{1,0:T(1,128)}', space=vmem, size = 0x12000, scoped, tag = 'internal scratch']
  #allocation2 [shape = 'f32[8,128]{1,0:T(8,128)}', space=vmem, size = 0x1000, scoped, tag = 'scratch operand']
  %s0 = inlined_call_operand.vmem [shape: f32[8,128], index: 0, kind: input, shape index: {}]
  %s1 = inlined_call_operand.vmem [shape: f32[128,32], index: 1, kind: input, shape index: {}]
  %s2 = inlined_call_operand.vmem [shape: f32[1,32], index: 2, kind: input, shape index: {}]
  %s3 = inlined_call_operand.vmem [shape: f32[1,32], index: 3, kind: input, shape index: {}]
  %s4 = inlined_call_operand.vmem [shape: f32[128,32], index: 4, kind: input, shape index: {}]
  %s5 = inlined_call_operand.vmem [shape: f32[1,32], index: 5, kind: input, shape index: {}]
  %s6 = inlined_call_operand.vmem [shape: f32[1,32], index: 6, kind: input, shape index: {}]
  %s7 = inlined_call_operand.vmem [shape: f32[128,128], index: 7, kind: input, shape index: {}]
  %s8 = inlined_call_operand.vmem [shape: f32[1,128], index: 8, kind: input, shape index: {}]
  %s9 = inlined_call_operand.hbm [shape: f32[8,128], index: 9, kind: output, shape index: {}]
  %s10 = sld [smem:[#allocation0]]
  $region46: #{forward.1} parent=0
    _
  %s12 = ssub.s32 1, %s10
  %s13 = scalar_select 0, %s12, %s10
  $region1: #{forward.1} parent=0
    #allocation3 [shape = 'u8[4096]{0}', space=vmem, size = 0x1000, scoped, tag = 'output window, operand 0, single buffered']
    #allocation4 [shape = 's32[1]{0}', space=sflag, size = 0x4, scoped, tag = 'scoped memory for forward.1']
    %14 = vsyncpa [#allocation4], 0
    // Predicated region
    $region2: #{forward.1} parent=1 // pred_check
      _
    $region3: #{forward.1} parent=1 // pred_check_branch
      %16 = sbr.rel (0) target = $region5
    $region4: #{forward.1} parent=1 // pred_region
      _
    $region5: #{forward.1} parent=1 // pred_fallthru
      _
    // Predicated region
    $region6: #{forward.1} parent=1 // pred_check
      _
    $region7: #{forward.1} parent=1 // pred_check_branch
      %18 = sbr.rel (0) target = $region9
    $region8: #{forward.1} parent=1 // pred_region
      _
    $region9: #{forward.1} parent=1 // pred_fallthru
      _
    // Predicated region
    $region10: #{forward.1} parent=1 // pred_check
      _
    $region11: #{forward.1} parent=1 // pred_check_branch
      %20 = sbr.rel (0) target = $region13
    $region12: #{forward.1} parent=1 // pred_region
      _
    $region13: #{forward.1} parent=1 // pred_fallthru
      _
    // Predicated region
    $region14: #{forward.1} parent=1 // pred_check
      _
    $region15: #{forward.1} parent=1 // pred_check_branch
      %22 = sbr.rel (0) target = $region17
    $region16: #{forward.1} parent=1 // pred_region
      _
    $region17: #{forward.1} parent=1 // pred_fallthru
      _
    // Predicated region
    $region18: #{forward.1} parent=1 // pred_check
      _
    $region19: #{forward.1} parent=1 // pred_check_branch
      %24 = sbr.rel (0) target = $region21
    $region20: #{forward.1} parent=1 // pred_region
      _
    $region21: #{forward.1} parent=1 // pred_fallthru
      _
    // Predicated region
    $region22: #{forward.1} parent=1 // pred_check
      _
    $region23: #{forward.1} parent=1 // pred_check_branch
      %26 = sbr.rel (0) target = $region25
    $region24: #{forward.1} parent=1 // pred_region
      _
    $region25: #{forward.1} parent=1 // pred_fallthru
      _
    // Predicated region
    $region26: #{forward.1} parent=1 // pred_check
      _
    $region27: #{forward.1} parent=1 // pred_check_branch
      %28 = sbr.rel (0) target = $region29
    $region28: #{forward.1} parent=1 // pred_region
      _
    $region29: #{forward.1} parent=1 // pred_fallthru
      _
    // Predicated region
    $region30: #{forward.1} parent=1 // pred_check
      _
    $region31: #{forward.1} parent=1 // pred_check_branch
      %30 = sbr.rel (0) target = $region33
    $region32: #{forward.1} parent=1 // pred_region
      _
    $region33: #{forward.1} parent=1 // pred_fallthru
      _
    // Predicated region
    $region34: #{forward.1} parent=1 // pred_check
      _
    $region35: #{forward.1} parent=1 // pred_check_branch
      %32 = sbr.rel (0) target = $region37
    $region36: #{forward.1} parent=1 // pred_region
      _
    $region37: #{forward.1} parent=1 // pred_fallthru
      _
    %v33 = vld [vmem:[%s0] sm:$0xff]
    %34 = vst [vmem:[#allocation2] sm:$0xff] %v33
    %v35 = vlaneseq
    %v36 = vshrl.u32 %v35, 7
    %vm37 = vcmp.lt.s32.totalorder %v36, 8
    %v38 = vsel %vm37, 1, 0
    %v39 = vcvt.s32.f32 %v38
    %v40 = vld [vmem:[%s1] sm:$0xff]
    %v41 = vld [vmem:[%s1 + $0x8] sm:$0xff]
    %v42 = vld [vmem:[%s1 + $0x10] sm:$0xff]
    %v43 = vld [vmem:[%s1 + $0x18] sm:$0xff]
    %v44 = vld [vmem:[%s1 + $0x20] sm:$0xff]
    %v45 = vld [vmem:[%s1 + $0x28] sm:$0xff]
    %v46 = vld [vmem:[%s1 + $0x30] sm:$0xff]
    %v47 = vld [vmem:[%s1 + $0x38] sm:$0xff]
    %v48 = vld [vmem:[%s1 + $0x40] sm:$0xff]
    %v49 = vld [vmem:[%s1 + $0x48] sm:$0xff]
    %v50 = vld [vmem:[%s1 + $0x50] sm:$0xff]
    %v51 = vld [vmem:[%s1 + $0x58] sm:$0xff]
    %v52 = vld [vmem:[%s1 + $0x60] sm:$0xff]
    %v53 = vld [vmem:[%s1 + $0x68] sm:$0xff]
    %v54 = vld [vmem:[%s1 + $0x70] sm:$0xff]
    %v55 = vld [vmem:[%s1 + $0x78] sm:$0xff]
    %v56 = vld [vmem:[%s2] sm:$0x1]
    %v57 = vld [vmem:[%s3] sm:$0x1]
    %v58 = vld [vmem:[#allocation2] sm:$0xff]
    %59 = vmatprep.subr.mxu0 0.0
    %60 = vmatpush1.msra.mxu0 %v40
    %61 = vmatprep.subr.mxu0 0.0
    %62 = vmatpush1.msra.mxu0 %v41
    %63 = vmatprep.subr.mxu0 0.0
    %64 = vmatpush1.msra.mxu0 %v42
    %65 = vmatprep.subr.mxu0 0.0
    %66 = vmatpush1.msra.mxu0 %v43
    %67 = vmatprep.subr.mxu0 0.0
    %68 = vmatpush1.msra.mxu0 %v44
    %69 = vmatprep.subr.mxu0 0.0
    %70 = vmatpush1.msra.mxu0 %v45
    %71 = vmatprep.subr.mxu0 0.0
    %72 = vmatpush1.msra.mxu0 %v46
    %73 = vmatprep.subr.mxu0 0.0
    %74 = vmatpush1.msra.mxu0 %v47
    %75 = vmatprep.subr.mxu0 0.0
    %76 = vmatpush1.msra.mxu0 %v48
    %77 = vmatprep.subr.mxu0 0.0
    %78 = vmatpush1.msra.mxu0 %v49
    %79 = vmatprep.subr.mxu0 0.0
    %80 = vmatpush1.msra.mxu0 %v50
    %81 = vmatprep.subr.mxu0 0.0
    %82 = vmatpush1.msra.mxu0 %v51
    %83 = vmatprep.subr.mxu0 0.0
    %84 = vmatpush1.msra.mxu0 %v52
    %85 = vmatprep.subr.mxu0 0.0
    %86 = vmatpush1.msra.mxu0 %v53
    %87 = vmatprep.subr.mxu0 0.0
    %88 = vmatpush1.msra.mxu0 %v54
    %89 = vmatprep.subr.mxu0 0.0
    %90 = vmatpush1.msra.mxu0 %v55
    %91 = vmatprep.subr.mxu0 0.0
    %92 = vmatpush1.msra.mxu0 0.0
    %93 = vmatprep.subr.mxu0 0.0
    %94 = vmatpush1.msra.mxu0 0.0
    %95 = vmatprep.subr.mxu0 0.0
    %96 = vmatpush1.msra.mxu0 0.0
    %97 = vmatprep.subr.mxu0 0.0
    %98 = vmatpush1.msra.mxu0 0.0
    %99 = vmatprep.subr.mxu0 0.0
    %100 = vmatpush1.msra.mxu0 0.0
    %101 = vmatprep.subr.mxu0 0.0
    %102 = vmatpush1.msra.mxu0 0.0
    %103 = vmatprep.subr.mxu0 0.0
    %104 = vmatpush1.msra.mxu0 0.0
    %105 = vmatprep.subr.mxu0 0.0
    %106 = vmatpush1.msra.mxu0 0.0
    %107 = vmatprep.subr.mxu0 0.0
    %108 = vmatpush1.msra.mxu0 0.0
    %109 = vmatprep.subr.mxu0 0.0
    %110 = vmatpush1.msra.mxu0 0.0
    %111 = vmatprep.subr.mxu0 0.0
    %112 = vmatpush1.msra.mxu0 0.0
    %113 = vmatprep.subr.mxu0 0.0
    %114 = vmatpush1.msra.mxu0 0.0
    %115 = vmatprep.subr.mxu0 0.0
    %116 = vmatpush1.msra.mxu0 0.0
    %117 = vmatprep.subr.mxu0 0.0
    %118 = vmatpush1.msra.mxu0 0.0
    %119 = vmatprep.subr.mxu0 0.0
    %120 = vmatpush1.msra.mxu0 0.0
    %121 = vmatprep.subr.mxu0 0.0
    %122 = vmatpush1.msra.mxu0 0.0
    %123 = vmatprep.mubr.f32.mxu0 0.0
    %124 = vmatmul.mubr.f32.gmra.mrb[0].mxu0 %v58
    %v125 = vpop.f32.mrb[0].mxu0
    %v126 = vadd.f32 0.0, %v125
    %v127 = vpop.f32.mrb[0].mxu0
    %128 = vdwg.mxu0
    %v129 = vmul.f32 %v126, %v39
    %vm130 = vcmask 261120
    %v131 = vsel %vm130, %v129, 0.0
    %v132 = vrot.slane %v131, 4
    %v133 = vadd.f32 %v131, %v132
    %v134 = vrot.slane %v133, 2
    %v135 = vadd.f32 %v133, %v134
    %v136 = vrot.slane %v135, 1
    %v137 = vadd.f32 %v135, %v136
    %v138 = vmul.f32 %v137, 0.125
    %v139 = vsub.f32 %v126, %v138
    %v140 = vmul.f32 %v139, %v39
    %v141 = vmul.f32 %v140, %v140
    %v142 = vsel %vm130, %v141, 0.0
    %v143 = vrot.slane %v142, 4
    %v144 = vadd.f32 %v142, %v143
    %v145 = vrot.slane %v144, 2
    %v146 = vadd.f32 %v144, %v145
    %v147 = vrot.slane %v146, 1
    %v148 = vadd.f32 %v146, %v147
    %v149 = vmul.f32 %v148, 0.125
    %v150 = vadd.f32 %v149, 1e-05
    %v151 = vrsqrt.pop %v150
    %v152 = vmul.f32 %v139, %v151
    %v154 = vlaneseq
    %v155 = vshrl.u32 %v154, 7
    %v156 = vsub.s32 0, %v155
    %v157 = vrot.slane %v56, %v156
    %v159 = vmul.f32 %v152, %v157
    %v161 = vlaneseq
    %v162 = vshrl.u32 %v161, 7
    %v163 = vsub.s32 0, %v162
    %v164 = vrot.slane %v57, %v163
    %v166 = vadd.f32 %v159, %v164
    %v167 = vmax.f32 %v166, 0.0
    %169 = vrot.lane.b32.xlu0 %v167, 32
    %v170 = vpop.permute.xlu0 %169
    %vm172 = vcmask 523520
    %173 = vst.msk [vmem:[#allocation2] sm:$0xff] %vm172, %v170
    %v174 = vld [vmem:[%s4] sm:$0xff]
    %v175 = vld [vmem:[%s4 + $0x8] sm:$0xff]
    %v176 = vld [vmem:[%s4 + $0x10] sm:$0xff]
    %v177 = vld [vmem:[%s4 + $0x18] sm:$0xff]
    %v178 = vld [vmem:[%s4 + $0x20] sm:$0xff]
    %v179 = vld [vmem:[%s4 + $0x28] sm:$0xff]
    %v180 = vld [vmem:[%s4 + $0x30] sm:$0xff]
    %v181 = vld [vmem:[%s4 + $0x38] sm:$0xff]
    %v182 = vld [vmem:[%s4 + $0x40] sm:$0xff]
    %v183 = vld [vmem:[%s4 + $0x48] sm:$0xff]
    %v184 = vld [vmem:[%s4 + $0x50] sm:$0xff]
    %v185 = vld [vmem:[%s4 + $0x58] sm:$0xff]
    %v186 = vld [vmem:[%s4 + $0x60] sm:$0xff]
    %v187 = vld [vmem:[%s4 + $0x68] sm:$0xff]
    %v188 = vld [vmem:[%s4 + $0x70] sm:$0xff]
    %v189 = vld [vmem:[%s4 + $0x78] sm:$0xff]
    %v190 = vld [vmem:[%s5] sm:$0x1]
    %v191 = vld [vmem:[%s6] sm:$0x1]
    %v192 = vld [vmem:[#allocation2] sm:$0xff]
    %193 = vmatprep.subr.mxu0 0.0
    %194 = vmatpush1.msra.mxu0 %v174
    %195 = vmatprep.subr.mxu0 0.0
    %196 = vmatpush1.msra.mxu0 %v175
    %197 = vmatprep.subr.mxu0 0.0
    %198 = vmatpush1.msra.mxu0 %v176
    %199 = vmatprep.subr.mxu0 0.0
    %200 = vmatpush1.msra.mxu0 %v177
    %201 = vmatprep.subr.mxu0 0.0
    %202 = vmatpush1.msra.mxu0 %v178
    %203 = vmatprep.subr.mxu0 0.0
    %204 = vmatpush1.msra.mxu0 %v179
    %205 = vmatprep.subr.mxu0 0.0
    %206 = vmatpush1.msra.mxu0 %v180
    %207 = vmatprep.subr.mxu0 0.0
    %208 = vmatpush1.msra.mxu0 %v181
    %209 = vmatprep.subr.mxu0 0.0
    %210 = vmatpush1.msra.mxu0 %v182
    %211 = vmatprep.subr.mxu0 0.0
    %212 = vmatpush1.msra.mxu0 %v183
    %213 = vmatprep.subr.mxu0 0.0
    %214 = vmatpush1.msra.mxu0 %v184
    %215 = vmatprep.subr.mxu0 0.0
    %216 = vmatpush1.msra.mxu0 %v185
    %217 = vmatprep.subr.mxu0 0.0
    %218 = vmatpush1.msra.mxu0 %v186
    %219 = vmatprep.subr.mxu0 0.0
    %220 = vmatpush1.msra.mxu0 %v187
    %221 = vmatprep.subr.mxu0 0.0
    %222 = vmatpush1.msra.mxu0 %v188
    %223 = vmatprep.subr.mxu0 0.0
    %224 = vmatpush1.msra.mxu0 %v189
    %225 = vmatprep.subr.mxu0 0.0
    %226 = vmatpush1.msra.mxu0 0.0
    %227 = vmatprep.subr.mxu0 0.0
    %228 = vmatpush1.msra.mxu0 0.0
    %229 = vmatprep.subr.mxu0 0.0
    %230 = vmatpush1.msra.mxu0 0.0
    %231 = vmatprep.subr.mxu0 0.0
    %232 = vmatpush1.msra.mxu0 0.0
    %233 = vmatprep.subr.mxu0 0.0
    %234 = vmatpush1.msra.mxu0 0.0
    %235 = vmatprep.subr.mxu0 0.0
    %236 = vmatpush1.msra.mxu0 0.0
    %237 = vmatprep.subr.mxu0 0.0
    %238 = vmatpush1.msra.mxu0 0.0
    %239 = vmatprep.subr.mxu0 0.0
    %240 = vmatpush1.msra.mxu0 0.0
    %241 = vmatprep.subr.mxu0 0.0
    %242 = vmatpush1.msra.mxu0 0.0
    %243 = vmatprep.subr.mxu0 0.0
    %244 = vmatpush1.msra.mxu0 0.0
    %245 = vmatprep.subr.mxu0 0.0
    %246 = vmatpush1.msra.mxu0 0.0
    %247 = vmatprep.subr.mxu0 0.0
    %248 = vmatpush1.msra.mxu0 0.0
    %249 = vmatprep.subr.mxu0 0.0
    %250 = vmatpush1.msra.mxu0 0.0
    %251 = vmatprep.subr.mxu0 0.0
    %252 = vmatpush1.msra.mxu0 0.0
    %253 = vmatprep.subr.mxu0 0.0
    %254 = vmatpush1.msra.mxu0 0.0
    %255 = vmatprep.subr.mxu0 0.0
    %256 = vmatpush1.msra.mxu0 0.0
    %257 = vmatprep.mubr.f32.mxu0 0.0
    %258 = vmatmul.mubr.f32.gmra.mrb[0].mxu0 %v192
    %v259 = vpop.f32.mrb[0].mxu0
    %v260 = vadd.f32 0.0, %v259
    %v261 = vpop.f32.mrb[0].mxu0
    %262 = vdwg.mxu0
    %v263 = vmul.f32 %v260, %v39
    %v264 = vsel %vm130, %v263, 0.0
    %v265 = vrot.slane %v264, 4
    %v266 = vadd.f32 %v264, %v265
    %v267 = vrot.slane %v266, 2
    %v268 = vadd.f32 %v266, %v267
    %v269 = vrot.slane %v268, 1
    %v270 = vadd.f32 %v268, %v269
    %v271 = vmul.f32 %v270, 0.125
    %v272 = vsub.f32 %v260, %v271
    %v273 = vmul.f32 %v272, %v39
    %v274 = vmul.f32 %v273, %v273
    %v275 = vsel %vm130, %v274, 0.0
    %v276 = vrot.slane %v275, 4
    %v277 = vadd.f32 %v275, %v276
    %v278 = vrot.slane %v277, 2
    %v279 = vadd.f32 %v277, %v278
    %v280 = vrot.slane %v279, 1
    %v281 = vadd.f32 %v279, %v280
    %v282 = vmul.f32 %v281, 0.125
    %v283 = vadd.f32 %v282, 1e-05
    %v284 = vrsqrt.pop %v283
    %v285 = vmul.f32 %v272, %v284
    %v287 = vlaneseq
    %v288 = vshrl.u32 %v287, 7
    %v289 = vsub.s32 0, %v288
    %v290 = vrot.slane %v190, %v289
    %v292 = vmul.f32 %v285, %v290
    %v294 = vlaneseq
    %v295 = vshrl.u32 %v294, 7
    %v296 = vsub.s32 0, %v295
    %v297 = vrot.slane %v191, %v296
    %v299 = vadd.f32 %v292, %v297
    %v300 = vmax.f32 %v299, 0.0
    %302 = vrot.lane.b32.xlu0 %v300, 64
    %v303 = vpop.permute.xlu0 %302
    %vm305 = vcmask 785920
    %306 = vst.msk [vmem:[#allocation2] sm:$0xff] %vm305, %v303
    %v307 = vld [vmem:[#allocation2] sm:$0xff]
    %v308 = vld [vmem:[%s7] sm:$0xff]
    %v309 = vld [vmem:[%s7 + $0x8] sm:$0xff]
    %v310 = vld [vmem:[%s7 + $0x10] sm:$0xff]
    %v311 = vld [vmem:[%s7 + $0x18] sm:$0xff]
    %v312 = vld [vmem:[%s7 + $0x20] sm:$0xff]
    %v313 = vld [vmem:[%s7 + $0x28] sm:$0xff]
    %v314 = vld [vmem:[%s7 + $0x30] sm:$0xff]
    %v315 = vld [vmem:[%s7 + $0x38] sm:$0xff]
    %v316 = vld [vmem:[%s7 + $0x40] sm:$0xff]
    %v317 = vld [vmem:[%s7 + $0x48] sm:$0xff]
    %v318 = vld [vmem:[%s7 + $0x50] sm:$0xff]
    %v319 = vld [vmem:[%s7 + $0x58] sm:$0xff]
    %v320 = vld [vmem:[%s7 + $0x60] sm:$0xff]
    %v321 = vld [vmem:[%s7 + $0x68] sm:$0xff]
    %v322 = vld [vmem:[%s7 + $0x70] sm:$0xff]
    %v323 = vld [vmem:[%s7 + $0x78] sm:$0xff]
    %v324 = vld [vmem:[%s8] sm:$0x1]
    %v326 = vlaneseq
    %v327 = vshrl.u32 %v326, 7
    %v328 = vsub.s32 0, %v327
    %v329 = vrot.slane %v324, %v328
    %331 = vmatprep.subr.mxu0 0.0
    %332 = vmatpush1.msra.mxu0 %v308
    %333 = vmatprep.subr.mxu0 0.0
    %334 = vmatpush1.msra.mxu0 %v309
    %335 = vmatprep.subr.mxu0 0.0
    %336 = vmatpush1.msra.mxu0 %v310
    %337 = vmatprep.subr.mxu0 0.0
    %338 = vmatpush1.msra.mxu0 %v311
    %339 = vmatprep.subr.mxu0 0.0
    %340 = vmatpush1.msra.mxu0 %v312
    %341 = vmatprep.subr.mxu0 0.0
    %342 = vmatpush1.msra.mxu0 %v313
    %343 = vmatprep.subr.mxu0 0.0
    %344 = vmatpush1.msra.mxu0 %v314
    %345 = vmatprep.subr.mxu0 0.0
    %346 = vmatpush1.msra.mxu0 %v315
    %347 = vmatprep.subr.mxu0 0.0
    %348 = vmatpush1.msra.mxu0 %v316
    %349 = vmatprep.subr.mxu0 0.0
    %350 = vmatpush1.msra.mxu0 %v317
    %351 = vmatprep.subr.mxu0 0.0
    %352 = vmatpush1.msra.mxu0 %v318
    %353 = vmatprep.subr.mxu0 0.0
    %354 = vmatpush1.msra.mxu0 %v319
    %355 = vmatprep.subr.mxu0 0.0
    %356 = vmatpush1.msra.mxu0 %v320
    %357 = vmatprep.subr.mxu0 0.0
    %358 = vmatpush1.msra.mxu0 %v321
    %359 = vmatprep.subr.mxu0 0.0
    %360 = vmatpush1.msra.mxu0 %v322
    %361 = vmatprep.subr.mxu0 0.0
    %362 = vmatpush1.msra.mxu0 %v323
    %363 = vmatprep.subr.mxu0 0.0
    %364 = vmatpush1.msra.mxu0 0.0
    %365 = vmatprep.subr.mxu0 0.0
    %366 = vmatpush1.msra.mxu0 0.0
    %367 = vmatprep.subr.mxu0 0.0
    %368 = vmatpush1.msra.mxu0 0.0
    %369 = vmatprep.subr.mxu0 0.0
    %370 = vmatpush1.msra.mxu0 0.0
    %371 = vmatprep.subr.mxu0 0.0
    %372 = vmatpush1.msra.mxu0 0.0
    %373 = vmatprep.subr.mxu0 0.0
    %374 = vmatpush1.msra.mxu0 0.0
    %375 = vmatprep.subr.mxu0 0.0
    %376 = vmatpush1.msra.mxu0 0.0
    %377 = vmatprep.subr.mxu0 0.0
    %378 = vmatpush1.msra.mxu0 0.0
    %379 = vmatprep.subr.mxu0 0.0
    %380 = vmatpush1.msra.mxu0 0.0
    %381 = vmatprep.subr.mxu0 0.0
    %382 = vmatpush1.msra.mxu0 0.0
    %383 = vmatprep.subr.mxu0 0.0
    %384 = vmatpush1.msra.mxu0 0.0
    %385 = vmatprep.subr.mxu0 0.0
    %386 = vmatpush1.msra.mxu0 0.0
    %387 = vmatprep.subr.mxu0 0.0
    %388 = vmatpush1.msra.mxu0 0.0
    %389 = vmatprep.subr.mxu0 0.0
    %390 = vmatpush1.msra.mxu0 0.0
    %391 = vmatprep.subr.mxu0 0.0
    %392 = vmatpush1.msra.mxu0 0.0
    %393 = vmatprep.subr.mxu0 0.0
    %394 = vmatpush1.msra.mxu0 0.0
    %395 = vmatprep.mubr.f32.mxu0 0.0
    %396 = vmatmul.mubr.f32.gmra.mrb[0].mxu0 %v307
    %v397 = vpop.f32.mrb[0].mxu0
    %v398 = vadd.f32 %v329, %v397
    %v399 = vpop.f32.mrb[0].mxu0
    %400 = vdwg.mxu0
    %401 = vst [vmem:[#allocation3] sm:$0xff] %v398
    // Predicated region
    $region38: #{forward.1} parent=1 // pred_check
      _
    $region39: #{forward.1} parent=1 // pred_check_branch
      %403 = sbr.rel (0) target = $region41
    $region40: #{forward.1} parent=1 // pred_region
      %s405 = ssub.s32 128, 128
      %406 = vsyncadd [#allocation4], %s405
      %s408 = sshll.u32 [#allocation3], 4
      %s409 = int_to_ptr.vmem [resolvable:$true] %s408
      %411 = dma.vmem_to_hbm [thread:$0]  %s409, 128, %s9, [#allocation4]
    $region41: #{forward.1} parent=1 // pred_fallthru
      _
    // Predicated region
    $region42: #{forward.1} parent=1 // pred_check
      _
    $region43: #{forward.1} parent=1 // pred_check_branch
      %413 = sbr.rel (0) target = $region45
    $region44: #{forward.1} parent=1 // pred_region
      %414 = dma.done [#allocation4], 128
    $region45: #{forward.1} parent=1 // pred_fallthru
      _
    %415 = vsyncpa [#allocation4], 1

</llo_original>
